<compile_context>
chip_gen: v7x
topology: tpu7x:2x2x1
jax: 0.10.0
libtpu: 0.0.40
codegen_flags: <defaults>
</compile_context>

<pallas_src>
import functools

import jax
import jax.numpy as jnp
from jax.experimental import pallas as pl
from jax.experimental.pallas import tpu as pltpu


def _condense_conv_kernel(x_ref, ss_ref, sh_ref, w_ref, o_ref, acc_ref):
    # x_ref : (1, c_x, thw)   input channels x spatial tile (lanes)
    # ss_ref: (tk, c_x)       scaled one-hot gather matrix (BN scale folded in)
    # sh_ref: (tk, 1)         BN shift (f32)
    # w_ref : (c_out, tk)     dense block-diag conv weight, rows pre-shuffled
    # o_ref : (1, c_out, thw)
    # acc_ref: (c_out, thw)   f32 accumulator, persistent across the k axis
    k = pl.program_id(2)

    @pl.when(k == 0)
    def _init():
        acc_ref[...] = jnp.zeros_like(acc_ref)

    x = x_ref[0]                                                   # (c_x, thw)
    # channel gather + BN scale on the MXU, f32 accumulation
    pre = jnp.dot(ss_ref[...], x, preferred_element_type=jnp.float32)
    act = jnp.maximum(pre + sh_ref[...], 0.0)                      # shift + ReLU
    acc_ref[...] += jnp.dot(w_ref[...], act.astype(w_ref.dtype),
                            preferred_element_type=jnp.float32)

    @pl.when(k == pl.num_programs(2) - 1)
    def _finalize():
        o_ref[0] = acc_ref[...].astype(o_ref.dtype)


def _pick_tile(n, candidates):
    for c in candidates:
        if n % c == 0:
            return c
    return n


@functools.partial(jax.jit, static_argnames=("groups",))
def condense_conv(x, index, gamma, beta, running_mean, running_var,
                  conv_weight, *, groups, eps=1e-5):
    """CondenseConv forward (kernel_size=1, stride=1, padding=0).

    x           : (B, C_x, H, W)
    index       : (c_in,) int32 channel indices into C_x (may repeat)
    gamma/beta/running_mean/running_var : (c_in,) BatchNorm2d params (eval mode)
    conv_weight : (c_out, c_in // groups, 1, 1) or (c_out, c_in // groups)
    returns     : (B, c_out, H, W), already channel-shuffled (ShuffleLayer)
    """
    # TODO(synk): training-mode BatchNorm (batch statistics) and kernel_size>1 /
    # stride>1 / padding>0 conv variants are not implemented (CondenseNet uses
    # the 1x1 / stride 1 / pad 0 configuration).
    B, c_x, H, W = x.shape
    c_in = index.shape[0]
    if conv_weight.ndim == 4:
        assert conv_weight.shape[2] == 1 and conv_weight.shape[3] == 1
        conv_weight = conv_weight[:, :, 0, 0]
    c_out, ipg = conv_weight.shape
    assert c_in == ipg * groups and c_out % groups == 0
    opg = c_out // groups

    compute_dtype = x.dtype

    # ---- fold BatchNorm (eval) into per-slot scale / shift (f32) ------------
    scale = (gamma / jnp.sqrt(running_var + eps)).astype(jnp.float32)
    shift = (beta - running_mean * scale).astype(jnp.float32)

    # ---- fold channel gather + BN scale into a scaled one-hot matrix --------
    # SS @ x[b]  ==  scale[:, None] * x[b, index, :]
    ss = jnp.zeros((c_in, c_x), jnp.float32)
    ss = ss.at[jnp.arange(c_in), index].set(scale)
    ss = ss.astype(compute_dtype)
    sh = shift.reshape(c_in, 1)                      # stays f32 inside kernel

    # ---- fold grouped conv + ShuffleLayer into one dense weight -------------
    # block-diagonal densification: W_d[oc, (oc//opg)*ipg + j] = w[oc, j]
    oc = jnp.arange(c_out)
    cols = (oc // opg)[:, None] * ipg + jnp.arange(ipg)[None, :]
    w_dense = jnp.zeros((c_out, c_in), jnp.float32)
    w_dense = w_dense.at[oc[:, None], cols].set(conv_weight.astype(jnp.float32))
    # ShuffleLayer is a pure output-channel permutation -> permute rows once.
    p = jnp.arange(c_out)
    oc_of_p = (p % groups) * opg + (p // groups)
    w_shuf = w_dense[oc_of_p].astype(compute_dtype)  # (c_out, c_in)

    # ---- tiled Pallas matmul -------------------------------------------------
    hw = H * W
    x3 = x.reshape(B, c_x, hw)

    thw = _pick_tile(hw, (512, 256, 128))            # lane-dense spatial tile
    # K tile must be a multiple of 128 or the full contraction dim.
    tk = _pick_tile(c_in, (256, 128)) if c_in % 128 == 0 else c_in

    grid = (B, hw // thw, c_in // tk)

    out3 = pl.pallas_call(
        _condense_conv_kernel,
        out_shape=jax.ShapeDtypeStruct((B, c_out, hw), compute_dtype),
        grid_spec=pltpu.PrefetchScalarGridSpec(
            num_scalar_prefetch=0,
            grid=grid,
            in_specs=[
                pl.BlockSpec((1, c_x, thw), lambda b, j, k: (b, 0, j)),
                pl.BlockSpec((tk, c_x), lambda b, j, k: (k, 0)),
                pl.BlockSpec((tk, 1), lambda b, j, k: (k, 0)),
                pl.BlockSpec((c_out, tk), lambda b, j, k: (0, k)),
            ],
            out_specs=pl.BlockSpec((1, c_out, thw), lambda b, j, k: (b, 0, j)),
            scratch_shapes=[pltpu.VMEM((c_out, thw), jnp.float32)],
        ),
        compiler_params=pltpu.CompilerParams(
            dimension_semantics=("parallel", "parallel", "arbitrary"),
            vmem_limit_bytes=32 * 1024 * 1024,
        ),
    )(x3, ss, sh, w_shuf)

    return out3.reshape(B, c_out, H, W)


def _reference(x, index, gamma, beta, running_mean, running_var, w2, groups,
               eps=1e-5):
    B, _, H, W = x.shape
    c_out, ipg = w2.shape
    opg = c_out // groups
    x_sel = x[:, index, :, :]
    scale = gamma / jnp.sqrt(running_var + eps)
    shift = beta - running_mean * scale
    act = jnp.maximum(
        x_sel * scale[None, :, None, None] + shift[None, :, None, None], 0.0)
    xg = act.reshape(B, groups, ipg, H, W)
    wg = w2.reshape(groups, opg, ipg)
    out = jnp.einsum('bgihw,goi->bgohw', xg, wg,
                     precision=jax.lax.Precision.HIGHEST)
    out = out.reshape(B, c_out, H, W)
    # ShuffleLayer
    out = out.reshape(B, groups, opg, H, W).transpose(0, 2, 1, 3, 4)
    return out.reshape(B, c_out, H, W)


if __name__ == "__main__":
    B, C_x, H, W = 2, 32, 32, 32
    in_channels, out_channels, groups = 16, 24, 4
    ipg = in_channels // groups

    key = jax.random.PRNGKey(0)
    kx, ki, kg, kb, km, kv, kw = jax.random.split(key, 7)

    x = jax.random.normal(kx, (B, C_x, H, W), dtype=jnp.float32)
    # learned selection buffer (may contain repeats, like the torch buffer)
    index = jax.random.randint(ki, (in_channels,), 0, C_x, dtype=jnp.int32)
    gamma = jax.random.uniform(kg, (in_channels,), minval=0.5, maxval=1.5)
    beta = 0.1 * jax.random.normal(kb, (in_channels,))
    running_mean = 0.1 * jax.random.normal(km, (in_channels,))
    running_var = jax.random.uniform(kv, (in_channels,), minval=0.5, maxval=1.5)
    bound = 1.0 / (ipg ** 0.5)
    conv_weight = jax.random.uniform(
        kw, (out_channels, ipg, 1, 1), minval=-bound, maxval=bound,
        dtype=jnp.float32)

    out = condense_conv(x, index, gamma, beta, running_mean, running_var,
                        conv_weight, groups=groups)
    out = jax.block_until_ready(out)

    ref = _reference(x, index, gamma, beta, running_mean, running_var,
                     conv_weight[:, :, 0, 0], groups)
    assert out.shape == (B, out_channels, H, W)
    assert jnp.allclose(out, ref, atol=1e-4, rtol=1e-4), float(
        jnp.max(jnp.abs(out - ref)))

    # bf16 activation/weight path (f32 accumulation in-kernel): 2-4x MXU
    # throughput and half the HBM traffic at production sizes.
    out_bf16 = condense_conv(
        x.astype(jnp.bfloat16), index, gamma, beta, running_mean, running_var,
        conv_weight, groups=groups)
    out_bf16 = jax.block_until_ready(out_bf16).astype(jnp.float32)
    assert jnp.allclose(out_bf16, ref, atol=2e-1, rtol=2e-1), float(
        jnp.max(jnp.abs(out_bf16 - ref)))

    print("KERNEL_OK")
</pallas_src>

<mosaic_0001>
module attributes {stable_mosaic.version = 11 : i64} {
  func.func @_condense_conv_kernel(%arg0: i32, %arg1: i32, %arg2: i32, %arg3: memref<1x32x512xf32, #tpu.memory_space<vmem>>, %arg4: memref<16x32xf32, #tpu.memory_space<vmem>>, %arg5: memref<16x1xf32, #tpu.memory_space<vmem>>, %arg6: memref<24x16xf32, #tpu.memory_space<vmem>>, %arg7: memref<1x24x512xf32, #tpu.memory_space<vmem>>, %arg8: memref<24x512xf32, #tpu.memory_space<vmem>>) attributes {dimension_semantics = [#tpu.dimension_semantics<parallel>, #tpu.dimension_semantics<parallel>, #tpu.dimension_semantics<arbitrary>], iteration_bounds = array<i64: 2, 2, 1>, scalar_prefetch = 0 : i64, scratch_operands = 1 : i64, tpu.core_type = #tpu.core_type<tc>, window_params = [{transform_indices = @transform_0, window_bounds = array<i64: 1, 32, 512>}, {transform_indices = @transform_1, window_bounds = array<i64: 16, 32>}, {transform_indices = @transform_2, window_bounds = array<i64: 16, 1>}, {transform_indices = @transform_3, window_bounds = array<i64: 24, 16>}, {transform_indices = @transform_4, window_bounds = array<i64: 1, 24, 512>}]} {
    %c0_i32 = arith.constant 0 : i32
    %0 = arith.cmpi eq, %arg2, %c0_i32 : i32
    %1 = arith.extui %0 : i1 to i32
    %c0_i32_0 = arith.constant 0 : i32
    %2 = arith.cmpi ne, %1, %c0_i32_0 : i32
    scf.if %2 {
      %cst_17 = arith.constant 0.000000e+00 : f32
      %20 = vector.broadcast %cst_17 : f32 to vector<24x512xf32>
      %c0_18 = arith.constant 0 : index
      %c0_19 = arith.constant 0 : index
      %21 = vector.load %arg8[%c0_18, %c0_19] : memref<24x512xf32, #tpu.memory_space<vmem>>, vector<24x512xf32>
      tpu.vector_store %arg8[%c0_18, %c0_19], %20 {strides = array<i32>} : memref<24x512xf32, #tpu.memory_space<vmem>>, vector<24x512xf32>,
    } else {
    }
    %c0 = arith.constant 0 : index
    %c0_1 = arith.constant 0 : index
    %c0_2 = arith.constant 0 : index
    %3 = vector.load %arg3[%c0, %c0_1, %c0_2] : memref<1x32x512xf32, #tpu.memory_space<vmem>>, vector<1x32x512xf32>
    %4 = vector.shape_cast %3 : vector<1x32x512xf32> to vector<32x512xf32>
    %c0_3 = arith.constant 0 : index
    %c0_4 = arith.constant 0 : index
    %5 = vector.load %arg4[%c0_3, %c0_4] : memref<16x32xf32, #tpu.memory_space<vmem>>, vector<16x32xf32>
    %cst = arith.constant dense<0.000000e+00> : vector<16x512xf32>
    %6 = tpu.matmul %5, %4, %cst {dimension_numbers = #tpu.dot_dimension_numbers<[1], [0], [0], [1], [0, 0, 1, 1], [], []>} : vector<16x32xf32>, vector<32x512xf32>, vector<16x512xf32> -> vector<16x512xf32>
    %c0_5 = arith.constant 0 : index
    %c0_6 = arith.constant 0 : index
    %7 = vector.load %arg5[%c0_5, %c0_6] : memref<16x1xf32, #tpu.memory_space<vmem>>, vector<16x1xf32>
    %8 = vector.broadcast %7 : vector<16x1xf32> to vector<16x512xf32>
    %9 = arith.addf %6, %8 : vector<16x512xf32>
    %cst_7 = arith.constant 0.000000e+00 : f32
    %10 = vector.broadcast %cst_7 : f32 to vector<16x512xf32>
    %11 = arith.maximumf %9, %10 : vector<16x512xf32>
    %c0_8 = arith.constant 0 : index
    %c0_9 = arith.constant 0 : index
    %12 = vector.load %arg8[%c0_8, %c0_9] : memref<24x512xf32, #tpu.memory_space<vmem>>, vector<24x512xf32>
    %c0_10 = arith.constant 0 : index
    %c0_11 = arith.constant 0 : index
    %13 = vector.load %arg6[%c0_10, %c0_11] : memref<24x16xf32, #tpu.memory_space<vmem>>, vector<24x16xf32>
    %cst_12 = arith.constant dense<0.000000e+00> : vector<24x512xf32>
    %14 = tpu.matmul %13, %11, %cst_12 {dimension_numbers = #tpu.dot_dimension_numbers<[1], [0], [0], [1], [0, 0, 1, 1], [], []>} : vector<24x16xf32>, vector<16x512xf32>, vector<24x512xf32> -> vector<24x512xf32>
    %15 = arith.addf %12, %14 : vector<24x512xf32>
    %c0_13 = arith.constant 0 : index
    %c0_14 = arith.constant 0 : index
    %16 = vector.load %arg8[%c0_13, %c0_14] : memref<24x512xf32, #tpu.memory_space<vmem>>, vector<24x512xf32>
    tpu.vector_store %arg8[%c0_13, %c0_14], %15 {strides = array<i32>} : memref<24x512xf32, #tpu.memory_space<vmem>>, vector<24x512xf32>,
    %c0_i32_15 = arith.constant 0 : i32
    %17 = arith.cmpi eq, %arg2, %c0_i32_15 : i32
    %18 = arith.extui %17 : i1 to i32
    %c0_i32_16 = arith.constant 0 : i32
    %19 = arith.cmpi ne, %18, %c0_i32_16 : i32
    scf.if %19 {
      %c0_17 = arith.constant 0 : index
      %c0_18 = arith.constant 0 : index
      %20 = vector.load %arg8[%c0_17, %c0_18] : memref<24x512xf32, #tpu.memory_space<vmem>>, vector<24x512xf32>
      %c0_19 = arith.constant 0 : index
      %c0_20 = arith.constant 0 : index
      %c0_21 = arith.constant 0 : index
      %21 = vector.load %arg7[%c0_19, %c0_20, %c0_21] : memref<1x24x512xf32, #tpu.memory_space<vmem>>, vector<1x24x512xf32>
      %22 = vector.shape_cast %21 : vector<1x24x512xf32> to vector<24x512xf32>
      %23 = vector.shape_cast %20 : vector<24x512xf32> to vector<1x24x512xf32>
      tpu.vector_store %arg7[%c0_19, %c0_20, %c0_21], %23 {strides = array<i32>} : memref<1x24x512xf32, #tpu.memory_space<vmem>>, vector<1x24x512xf32>,
    } else {
    }
    return
  }
  func.func @transform_0(%arg0: i32, %arg1: i32, %arg2: i32) -> (i32, i32, i32) {
    %c0_i32 = arith.constant 0 : i32
    %c0_i32_0 = arith.constant 0 : i32
    return %arg0, %c0_i32, %arg1 : i32, i32, i32
  }
  func.func @transform_1(%arg0: i32, %arg1: i32, %arg2: i32) -> (i32, i32) {
    %c0_i32 = arith.constant 0 : i32
    %c0_i32_0 = arith.constant 0 : i32
    return %arg2, %c0_i32 : i32, i32
  }
  func.func @transform_2(%arg0: i32, %arg1: i32, %arg2: i32) -> (i32, i32) {
    %c0_i32 = arith.constant 0 : i32
    %c0_i32_0 = arith.constant 0 : i32
    return %arg2, %c0_i32 : i32, i32
  }
  func.func @transform_3(%arg0: i32, %arg1: i32, %arg2: i32) -> (i32, i32) {
    %c0_i32 = arith.constant 0 : i32
    %c0_i32_0 = arith.constant 0 : i32
    return %c0_i32, %arg2 : i32, i32
  }
  func.func @transform_4(%arg0: i32, %arg1: i32, %arg2: i32) -> (i32, i32, i32) {
    %c0_i32 = arith.constant 0 : i32
    %c0_i32_0 = arith.constant 0 : i32
    return %arg0, %c0_i32, %arg1 : i32, i32, i32
  }
}

</mosaic_0001>

<llo_original>
// kernel: condense_conv.1
$region0: #{condense_conv.1}
  #allocation0 [shape = 'u32[]', space=smem, size = 0x4, offset = 0x4, fixed_abs, tag = 'smem constant byte address 0x4 - core index']
  #allocation1 [shape = 'u32[144,128]{1,0:T(1,128)}', space=vmem, size = 0x12000, scoped, tag = 'internal scratch']
  #allocation2 [shape = 'f32[24,512]{1,0:T(8,128)}', space=vmem, size = 0xc000, scoped, tag = 'scratch operand']
  %s0 = inlined_call_operand.vmem [shape: f32[2,32,1024], index: 0, kind: input, shape index: {}]
  %s1 = inlined_call_operand.vmem [shape: f32[16,32], index: 1, kind: input, shape index: {}]
  %s2 = inlined_call_operand.vmem [shape: f32[16,1], index: 2, kind: input, shape index: {}]
  %s3 = inlined_call_operand.vmem [shape: f32[24,16], index: 3, kind: input, shape index: {}]
  %s4 = inlined_call_operand.vmem [shape: f32[2,24,1024], index: 4, kind: output, shape index: {}]
  %s5 = sld [smem:[#allocation0]]
  $region99: #{condense_conv.1} parent=0
    _
  %s7 = ssub.s32 1, %s5
  %s8 = scalar_select 0, %s7, %s5
  $region1: #{condense_conv.1} parent=0
    #allocation3 [shape = 'u8[131072]{0}', space=vmem, size = 0x20000, scoped, tag = 'input window, operand 0']
    #allocation4 [shape = 'u8[98304]{0}', space=vmem, size = 0x18000, scoped, tag = 'output window, operand 0']
    loop: start=0, step=1, limit=6
    $region2: #{condense_conv.1} parent=1 // loop_pre_header
      _
    $region3: #{condense_conv.1} parent=1 // loop_header
      %s10 = sphi 0, %s14
      %p11 = scmp.ge.s32.totalorder %s10, 6
      %s17 = sphi 0, %s36
      %s18 = sphi 0, %s32
      %s19 = sphi 0, %s28
      %s20 = sphi 0, %s17
      %s21 = sphi 0, %s18
      %s22 = sphi 0, %s19
      %s23 = sphi 0, %s20
      %s24 = sphi 0, %s21
      %s25 = sphi 0, %s22
      %s41 = sphi 0, %s43
      %s44 = sphi 0, %s41
      %s45 = sphi 0, %s44
      %s61 = sphi 0, %s45
      %s67 = sphi 0, %s69
      %s70 = sphi 0, %s67
      %s71 = sphi 0, %s70
      %s87 = sphi 0, %s71
      %s93 = sphi 0, %s95
      %s96 = sphi 0, %s93
      %s97 = sphi 0, %s96
      %s113 = sphi 0, %s97
      %s119 = sphi 0, %s121
      %s122 = sphi 0, %s119
      %s123 = sphi 0, %s122
      %s139 = sphi 0, %s123
      %s147 = sphi 0, %s149
      %s150 = sphi 0, %s147
      %s151 = sphi 0, %s150
      %s167 = sphi 0, %s151
    $region4: #{condense_conv.1} parent=1 // loop_header_branch
      %13 = sbr.rel (%p11) target = $region8
    $region5: #{condense_conv.1} parent=1 // loop_body
      %s15 = ssub.s32 %s10, 1
      %s16 = ssub.s32 %s10, 2
      %s26 = sadd.s32 1, %s19
      %p27 = scmp.ge.s32.totalorder %s26, 1
      %s28 = scalar_select %p27, 0, %s26
      %s29 = sadd.s32 1, %s18
      %s30 = scalar_select %p27, %s29, %s18
      %p31 = scmp.ge.s32.totalorder %s30, 2
      %s32 = scalar_select %p31, 0, %s30
      %s33 = sadd.s32 1, %s17
      %s34 = scalar_select %p31, %s33, %s17
      %p35 = scmp.ge.s32.totalorder %s34, 2
      %s36 = scalar_select %p35, 0, %s34
      %s37 = ssub.s32 %s17, %s36
      %s38 = ssub.s32 %s18, %s32
      %s39 = sor.u32 %s37, %s38
      %p40 = scmp.eq.s32.totalorder %s39, 0
      %s42 = sadd.s32 %s41, 1
      %s43 = scalar_select %p40, %s41, %s42
      %p46 = pneg %p40
      %p47 = scmp.eq.s32.totalorder %s10, 3
      %p48 = por %p46, %p47
      %p49 = scmp.ne.s32.totalorder %s41, %s44
      %p50 = scmp.eq.s32.totalorder %s10, 0
      %p51 = por %p49, %p50
      %p52 = scmp.ne.s32.totalorder %s41, %s44
      %p53 = scmp.eq.s32.totalorder %s15, 3
      %p54 = por %p52, %p53
      %p55 = scmp.ne.s32.totalorder %s44, %s45
      %p56 = scmp.eq.s32.totalorder %s15, 0
      %p57 = por %p55, %p56
      %p58 = scmp.ne.s32.totalorder %s44, %s45
      %p59 = scmp.eq.s32.totalorder %s16, 3
      %p60 = por %p58, %p59
      %p62 = scmp.ne.s32.totalorder %s45, %s61
      %p63 = scmp.eq.s32.totalorder %s16, 0
      %p64 = por %p62, %p63
      %s65 = ssub.s32 %s19, %s28
      %p66 = scmp.eq.s32.totalorder %s65, 0
      %s68 = sadd.s32 %s67, 1
      %s69 = scalar_select %p66, %s67, %s68
      %p72 = pneg %p66
      %p73 = scmp.eq.s32.totalorder %s10, 3
      %p74 = por %p72, %p73
      %p75 = scmp.ne.s32.totalorder %s67, %s70
      %p76 = scmp.eq.s32.totalorder %s10, 0
      %p77 = por %p75, %p76
      %p78 = scmp.ne.s32.totalorder %s67, %s70
      %p79 = scmp.eq.s32.totalorder %s15, 3
      %p80 = por %p78, %p79
      %p81 = scmp.ne.s32.totalorder %s70, %s71
      %p82 = scmp.eq.s32.totalorder %s15, 0
      %p83 = por %p81, %p82
      %p84 = scmp.ne.s32.totalorder %s70, %s71
      %p85 = scmp.eq.s32.totalorder %s16, 3
      %p86 = por %p84, %p85
      %p88 = scmp.ne.s32.totalorder %s71, %s87
      %p89 = scmp.eq.s32.totalorder %s16, 0
      %p90 = por %p88, %p89
      %s91 = ssub.s32 %s19, %s28
      %p92 = scmp.eq.s32.totalorder %s91, 0
      %s94 = sadd.s32 %s93, 1
      %s95 = scalar_select %p92, %s93, %s94
      %p98 = pneg %p92
      %p99 = scmp.eq.s32.totalorder %s10, 3
      %p100 = por %p98, %p99
      %p101 = scmp.ne.s32.totalorder %s93, %s96
      %p102 = scmp.eq.s32.totalorder %s10, 0
      %p103 = por %p101, %p102
      %p104 = scmp.ne.s32.totalorder %s93, %s96
      %p105 = scmp.eq.s32.totalorder %s15, 3
      %p106 = por %p104, %p105
      %p107 = scmp.ne.s32.totalorder %s96, %s97
      %p108 = scmp.eq.s32.totalorder %s15, 0
      %p109 = por %p107, %p108
      %p110 = scmp.ne.s32.totalorder %s96, %s97
      %p111 = scmp.eq.s32.totalorder %s16, 3
      %p112 = por %p110, %p111
      %p114 = scmp.ne.s32.totalorder %s97, %s113
      %p115 = scmp.eq.s32.totalorder %s16, 0
      %p116 = por %p114, %p115
      %s117 = ssub.s32 %s19, %s28
      %p118 = scmp.eq.s32.totalorder %s117, 0
      %s120 = sadd.s32 %s119, 1
      %s121 = scalar_select %p118, %s119, %s120
      %p124 = pneg %p118
      %p125 = scmp.eq.s32.totalorder %s10, 3
      %p126 = por %p124, %p125
      %p127 = scmp.ne.s32.totalorder %s119, %s122
      %p128 = scmp.eq.s32.totalorder %s10, 0
      %p129 = por %p127, %p128
      %p130 = scmp.ne.s32.totalorder %s119, %s122
      %p131 = scmp.eq.s32.totalorder %s15, 3
      %p132 = por %p130, %p131
      %p133 = scmp.ne.s32.totalorder %s122, %s123
      %p134 = scmp.eq.s32.totalorder %s15, 0
      %p135 = por %p133, %p134
      %p136 = scmp.ne.s32.totalorder %s122, %s123
      %p137 = scmp.eq.s32.totalorder %s16, 3
      %p138 = por %p136, %p137
      %p140 = scmp.ne.s32.totalorder %s123, %s139
      %p141 = scmp.eq.s32.totalorder %s16, 0
      %p142 = por %p140, %p141
      %s143 = ssub.s32 %s17, %s36
      %s144 = ssub.s32 %s18, %s32
      %s145 = sor.u32 %s143, %s144
      %p146 = scmp.eq.s32.totalorder %s145, 0
      %s148 = sadd.s32 %s147, 1
      %s149 = scalar_select %p146, %s147, %s148
      %p152 = pneg %p146
      %p153 = scmp.eq.s32.totalorder %s10, 3
      %p154 = por %p152, %p153
      %p155 = scmp.ne.s32.totalorder %s147, %s150
      %p156 = scmp.eq.s32.totalorder %s10, 0
      %p157 = por %p155, %p156
      %p158 = scmp.ne.s32.totalorder %s147, %s150
      %p159 = scmp.eq.s32.totalorder %s15, 3
      %p160 = por %p158, %p159
      %p161 = scmp.ne.s32.totalorder %s150, %s151
      %p162 = scmp.eq.s32.totalorder %s15, 0
      %p163 = por %p161, %p162
      %p164 = scmp.ne.s32.totalorder %s150, %s151
      %p165 = scmp.eq.s32.totalorder %s16, 3
      %p166 = por %p164, %p165
      %p168 = scmp.ne.s32.totalorder %s151, %s167
      %p169 = scmp.eq.s32.totalorder %s16, 0
      %p170 = por %p168, %p169
      %p171 = scmp.le.s32.totalorder 1, %s10
      %p172 = scmp.lt.s32.totalorder %s10, 5
      %p173 = pnand %p171, %p172
      %p174 = pneg %p173
      // Predicated region
      $region9: #{condense_conv.1} parent=5 // pred_check
        _
      $region10: #{condense_conv.1} parent=5 // pred_check_branch
        %176 = sbr.rel (%p173) target = $region12
      $region11: #{condense_conv.1} parent=5 // pred_region
        %s177 = ssub.s32 %s10, 1
        // Predicated region
        $region13: #{condense_conv.1} parent=11 // pred_check
          %p178 = pneg %p83
        $region14: #{condense_conv.1} parent=11 // pred_check_branch
          %180 = sbr.rel (%p178) target = $region16
        $region15: #{condense_conv.1} parent=11 // pred_region
          %s181 = smul.u32 2, %s22
          %p182 = scmp.lt.s32.totalorder %s181, 1
          %s183 = scalar_select %p182, %s181, 1
          %s184 = smul.addr %s183, 8
          %s185 = scalar_lea.vmem %s1, %s184
          %s186 = smul.u32 2, %s22
        $region16: #{condense_conv.1} parent=11 // pred_fallthru
          _
        // Predicated region
        $region17: #{condense_conv.1} parent=11 // pred_check
          %p187 = pneg %p109
        $region18: #{condense_conv.1} parent=11 // pred_check_branch
          %189 = sbr.rel (%p187) target = $region20
        $region19: #{condense_conv.1} parent=11 // pred_region
          %s190 = smul.u32 2, %s22
          %p191 = scmp.lt.s32.totalorder %s190, 1
          %s192 = scalar_select %p191, %s190, 1
          %s193 = smul.addr %s192, 8
          %s194 = scalar_lea.vmem %s2, %s193
          %s195 = smul.u32 2, %s22
        $region20: #{condense_conv.1} parent=11 // pred_fallthru
          _
        // Predicated region
        $region21: #{condense_conv.1} parent=11 // pred_check
          %p196 = pneg %p135
        $region22: #{condense_conv.1} parent=11 // pred_check_branch
          %198 = sbr.rel (%p196) target = $region24
        $region23: #{condense_conv.1} parent=11 // pred_region
          %p199 = scmp.lt.s32.totalorder %s22, 0
          %s200 = scalar_select %p199, %s22, 0
          %s201 = smul.addr %s200, 8
          %s202 = scalar_lea.vmem %s3, %s201
        $region24: #{condense_conv.1} parent=11 // pred_fallthru
          _
      $region12: #{condense_conv.1} parent=5 // pred_fallthru
        _
      %p203 = scmp.lt.s32.totalorder %s10, 4
      // Predicated region
      $region25: #{condense_conv.1} parent=5 // pred_check
        %p204 = pneg %p203
      $region26: #{condense_conv.1} parent=5 // pred_check_branch
        %206 = sbr.rel (%p204) target = $region28
      $region27: #{condense_conv.1} parent=5 // pred_region
        // Predicated region
        $region29: #{condense_conv.1} parent=27 // pred_check
          %p207 = pneg %p51
        $region30: #{condense_conv.1} parent=27 // pred_check_branch
          %209 = sbr.rel (%p207) target = $region32
        $region31: #{condense_conv.1} parent=27 // pred_region
          %s210 = sand.u32 %s41, 1
          %s211 = sand.u32 %s41, 1
          %s212 = smul.addr %s211, 128
          %s213 = scalar_lea.vmem [#allocation3], %s212
          %s214 = smul.u32 4, %s18
          %s215 = smul.addr %s17, 32
          %s216 = sadd.s32 %s214, %s215
          %s217 = smul.addr %s216, 8
          %s218 = scalar_lea.vmem %s0, %s217
          // Predicated region
          $region33: #{condense_conv.1} parent=31 // pred_check
            _
          $region34: #{condense_conv.1} parent=31 // pred_check_branch
            %220 = sbr.rel (0) target = $region36
          $region35: #{condense_conv.1} parent=31 // pred_region
            // Predicated region
            $region37: #{condense_conv.1} parent=35 // pred_check
              _
            $region38: #{condense_conv.1} parent=35 // pred_check_branch
              %222 = sbr.rel (0) target = $region40
            $region39: #{condense_conv.1} parent=35 // pred_region
              loop: start=0, step=1, limit=1
              $region41: #{condense_conv.1} parent=39 // loop_pre_header
                _
              $region42: #{condense_conv.1} parent=39 // loop_header
                %s224 = sphi 0, %s228
                %p225 = scmp.ge.s32.totalorder %s224, 1
                %s229 = sphi %s218, %s218
                %s230 = sphi %s213, %s213
              $region43: #{condense_conv.1} parent=39 // loop_header_branch
                %227 = sbr.rel (%p225) target = $region47
              $region44: #{condense_conv.1} parent=39 // loop_body
                %v231 = vld [vmem:[%s229] sm:$0xff]
                %232 = vst [vmem:[%s230] sm:$0xff] %v231
                %v233 = vld [vmem:[%s229 + $0x8] sm:$0xff]
                %234 = vst [vmem:[%s230 + $0x8] sm:$0xff] %v233
                %v235 = vld [vmem:[%s229 + $0x10] sm:$0xff]
                %236 = vst [vmem:[%s230 + $0x10] sm:$0xff] %v235
                %v237 = vld [vmem:[%s229 + $0x18] sm:$0xff]
                %238 = vst [vmem:[%s230 + $0x18] sm:$0xff] %v237
                %v239 = vld [vmem:[%s229 + $0x40] sm:$0xff]
                %240 = vst [vmem:[%s230 + $0x20] sm:$0xff] %v239
                %v241 = vld [vmem:[%s229 + $0x48] sm:$0xff]
                %242 = vst [vmem:[%s230 + $0x28] sm:$0xff] %v241
                %v243 = vld [vmem:[%s229 + $0x50] sm:$0xff]
                %244 = vst [vmem:[%s230 + $0x30] sm:$0xff] %v243
                %v245 = vld [vmem:[%s229 + $0x58] sm:$0xff]
                %246 = vst [vmem:[%s230 + $0x38] sm:$0xff] %v245
                %v247 = vld [vmem:[%s229 + $0x80] sm:$0xff]
                %248 = vst [vmem:[%s230 + $0x40] sm:$0xff] %v247
                %v249 = vld [vmem:[%s229 + $0x88] sm:$0xff]
                %250 = vst [vmem:[%s230 + $0x48] sm:$0xff] %v249
                %v251 = vld [vmem:[%s229 + $0x90] sm:$0xff]
                %252 = vst [vmem:[%s230 + $0x50] sm:$0xff] %v251
                %v253 = vld [vmem:[%s229 + $0x98] sm:$0xff]
                %254 = vst [vmem:[%s230 + $0x58] sm:$0xff] %v253
                %v255 = vld [vmem:[%s229 + $0xc0] sm:$0xff]
                %256 = vst [vmem:[%s230 + $0x60] sm:$0xff] %v255
                %v257 = vld [vmem:[%s229 + $0xc8] sm:$0xff]
                %258 = vst [vmem:[%s230 + $0x68] sm:$0xff] %v257
                %v259 = vld [vmem:[%s229 + $0xd0] sm:$0xff]
                %260 = vst [vmem:[%s230 + $0x70] sm:$0xff] %v259
                %v261 = vld [vmem:[%s229 + $0xd8] sm:$0xff]
                %262 = vst [vmem:[%s230 + $0x78] sm:$0xff] %v261
              $region45: #{condense_conv.1} parent=39 // loop_footer
                %s228 = sadd.s32 1, %s224
              $region46: #{condense_conv.1} parent=39 // loop_footer_branch
                %223 = sbr.rel target = $region42
              $region47: #{condense_conv.1} parent=39 // loop_exit
                _
            $region40: #{condense_conv.1} parent=35 // pred_fallthru
              _
            // Predicated region
            $region48: #{condense_conv.1} parent=35 // pred_check
              _
            $region49: #{condense_conv.1} parent=35 // pred_check_branch
              %264 = sbr.rel target = $region51
            $region50: #{condense_conv.1} parent=35 // pred_region
              _
            $region51: #{condense_conv.1} parent=35 // pred_fallthru
              _
          $region36: #{condense_conv.1} parent=31 // pred_fallthru
            _
          %265 = vnop
        $region32: #{condense_conv.1} parent=27 // pred_fallthru
          _
      $region28: #{condense_conv.1} parent=5 // pred_fallthru
        _
      %p266 = scmp.le.s32.totalorder 1, %s10
      %p267 = scmp.lt.s32.totalorder %s10, 5
      %p268 = pnand %p266, %p267
      %p269 = pneg %p268
      // Predicated region
      $region52: #{condense_conv.1} parent=5 // pred_check
        _
      $region53: #{condense_conv.1} parent=5 // pred_check_branch
        %271 = sbr.rel (%p268) target = $region55
      $region54: #{condense_conv.1} parent=5 // pred_region
        %s272 = ssub.s32 %s10, 1
        %s273 = sand.u32 %s44, 1
        %s274 = sand.u32 %s44, 1
        %s275 = smul.addr %s274, 128
        %s276 = scalar_lea.vmem [#allocation3], %s275
        // Predicated region
        $region56: #{condense_conv.1} parent=54 // pred_check
          %p277 = pneg %p57
        $region57: #{condense_conv.1} parent=54 // pred_check_branch
          %279 = sbr.rel (%p277) target = $region59
        $region58: #{condense_conv.1} parent=54 // pred_region
          _
        $region59: #{condense_conv.1} parent=54 // pred_fallthru
          _
        %s280 = sand.u32 %s44, 1
        %s281 = sand.u32 %s44, 1
        %s282 = smul.addr %s281, 128
        %s283 = scalar_lea.vmem [#allocation3], %s282
        %p284 = pneg %p57
        %p285 = pneg %p54
        %s286 = smul.u32 2, %s22
        %p287 = scmp.lt.s32.totalorder %s286, 1
        %s288 = scalar_select %p287, %s286, 1
        %s289 = smul.addr %s288, 8
        %s290 = scalar_lea.vmem %s1, %s289
        %p291 = pneg %p83
        %p292 = pneg %p80
        %s293 = smul.u32 2, %s22
        %p294 = scmp.lt.s32.totalorder %s293, 1
        %s295 = scalar_select %p294, %s293, 1
        %s296 = smul.addr %s295, 8
        %s297 = scalar_lea.vmem %s2, %s296
        %p298 = pneg %p109
        %p299 = pneg %p106
        %p300 = scmp.lt.s32.totalorder %s22, 0
        %s301 = scalar_select %p300, %s22, 0
        %s302 = smul.addr %s301, 8
        %s303 = scalar_lea.vmem %s3, %s302
        %p304 = pneg %p135
        %p305 = pneg %p132
        %p306 = pneg %p163
        %p307 = pneg %p160
        %s308 = sand.u32 %s150, 1
        %s309 = sand.u32 %s150, 1
        %s310 = smul.addr %s309, 96
        %s311 = scalar_lea.vmem [#allocation4], %s310
        %s312 = smul.u32 4, %s21
        %s313 = smul.u32 2, %s22
        %p314 = scmp.lt.s32.totalorder %s313, 1
        %s315 = scalar_select %p314, %s313, 1
        %s316 = smul.addr %s315, 8
        %s317 = scalar_lea.vmem %s1, %s316
        %s318 = smul.u32 2, %s22
        %s319 = smul.u32 2, %s22
        %p320 = scmp.lt.s32.totalorder %s319, 1
        %s321 = scalar_select %p320, %s319, 1
        %s322 = smul.addr %s321, 8
        %s323 = scalar_lea.vmem %s2, %s322
        %s324 = smul.u32 2, %s22
        %p325 = scmp.lt.s32.totalorder %s22, 0
        %s326 = scalar_select %p325, %s22, 0
        %s327 = smul.addr %s326, 8
        %s328 = scalar_lea.vmem %s3, %s327
        %s329 = smul.u32 4, %s21
        %p330 = scmp.eq.s32.totalorder %s22, 0
        // Predicated region
        $region60: #{condense_conv.1} parent=54 // pred_check
          %p331 = pneg %p330
        $region61: #{condense_conv.1} parent=54 // pred_check_branch
          %333 = sbr.rel (%p331) target = $region63
        $region62: #{condense_conv.1} parent=54 // pred_region
          %334 = vst [vmem:[#allocation2] sm:$0xff] 0.0
          %335 = vst [vmem:[#allocation2 + $0x8] sm:$0xff] 0.0
          %336 = vst [vmem:[#allocation2 + $0x10] sm:$0xff] 0.0
          %337 = vst [vmem:[#allocation2 + $0x18] sm:$0xff] 0.0
          %338 = vst [vmem:[#allocation2 + $0x20] sm:$0xff] 0.0
          %339 = vst [vmem:[#allocation2 + $0x28] sm:$0xff] 0.0
          %340 = vst [vmem:[#allocation2 + $0x30] sm:$0xff] 0.0
          %341 = vst [vmem:[#allocation2 + $0x38] sm:$0xff] 0.0
          %342 = vst [vmem:[#allocation2 + $0x40] sm:$0xff] 0.0
          %343 = vst [vmem:[#allocation2 + $0x48] sm:$0xff] 0.0
          %344 = vst [vmem:[#allocation2 + $0x50] sm:$0xff] 0.0
          %345 = vst [vmem:[#allocation2 + $0x58] sm:$0xff] 0.0
        $region63: #{condense_conv.1} parent=54 // pred_fallthru
          _
        %v346 = vld [vmem:[%s276] sm:$0xff]
        %v347 = vld [vmem:[%s276 + $0x8] sm:$0xff]
        %v348 = vld [vmem:[%s276 + $0x10] sm:$0xff]
        %v349 = vld [vmem:[%s276 + $0x18] sm:$0xff]
        %v350 = vld [vmem:[%s276 + $0x20] sm:$0xff]
        %v351 = vld [vmem:[%s276 + $0x28] sm:$0xff]
        %v352 = vld [vmem:[%s276 + $0x30] sm:$0xff]
        %v353 = vld [vmem:[%s276 + $0x38] sm:$0xff]
        %v354 = vld [vmem:[%s276 + $0x40] sm:$0xff]
        %v355 = vld [vmem:[%s276 + $0x48] sm:$0xff]
        %v356 = vld [vmem:[%s276 + $0x50] sm:$0xff]
        %v357 = vld [vmem:[%s276 + $0x58] sm:$0xff]
        %v358 = vld [vmem:[%s276 + $0x60] sm:$0xff]
        %v359 = vld [vmem:[%s276 + $0x68] sm:$0xff]
        %v360 = vld [vmem:[%s276 + $0x70] sm:$0xff]
        %v361 = vld [vmem:[%s276 + $0x78] sm:$0xff]
        %v362 = vld [vmem:[%s317] sm:$0xff]
        %v363 = vld [vmem:[%s317 + $0x8] sm:$0xff]
        %v364 = vld [vmem:[%s323] sm:$0xff]
        %v365 = vld [vmem:[%s323 + $0x8] sm:$0xff]
        %367 = vset.pattern.permute.xlu0 0
        %368 = vperm.xlu0 %367, %v364
        %v369 = vpop.permute.xlu0 %368
        %372 = vset.pattern.permute.xlu0 0
        %373 = vperm.xlu0 %372, %v365
        %v374 = vpop.permute.xlu0 %373
        %vm376 = vcmask 261120
        %v378 = vsel %vm376, %v362, 0
        %v381 = vsel %vm376, %v363, 0
        %383 = vmatprep.subr.mxu0 %v347
        %384 = vmatpush1.msra.mxu0 %v346
        %385 = vmatprep.subr.mxu0 %v351
        %386 = vmatpush1.msra.mxu0 %v350
        %387 = vmatprep.subr.mxu0 %v355
        %388 = vmatpush1.msra.mxu0 %v354
        %389 = vmatprep.subr.mxu0 %v359
        %390 = vmatpush1.msra.mxu0 %v358
        %391 = vmatprep.subr.mxu0 0.0
        %392 = vmatpush1.msra.mxu0 0.0
        %393 = vmatprep.subr.mxu0 0.0
        %394 = vmatpush1.msra.mxu0 0.0
        %395 = vmatprep.subr.mxu0 0.0
        %396 = vmatpush1.msra.mxu0 0.0
        %397 = vmatprep.subr.mxu0 0.0
        %398 = vmatpush1.msra.mxu0 0.0
        %399 = vmatprep.subr.mxu0 0.0
        %400 = vmatpush1.msra.mxu0 0.0
        %401 = vmatprep.subr.mxu0 0.0
        %402 = vmatpush1.msra.mxu0 0.0
        %403 = vmatprep.subr.mxu0 0.0
        %404 = vmatpush1.msra.mxu0 0.0
        %405 = vmatprep.subr.mxu0 0.0
        %406 = vmatpush1.msra.mxu0 0.0
        %407 = vmatprep.subr.mxu0 0.0
        %408 = vmatpush1.msra.mxu0 0.0
        %409 = vmatprep.subr.mxu0 0.0
        %410 = vmatpush1.msra.mxu0 0.0
        %411 = vmatprep.subr.mxu0 0.0
        %412 = vmatpush1.msra.mxu0 0.0
        %413 = vmatprep.subr.mxu0 0.0
        %414 = vmatpush1.msra.mxu0 0.0
        %415 = vmatprep.subr.mxu0 0.0
        %416 = vmatpush1.msra.mxu0 0.0
        %417 = vmatprep.subr.mxu0 0.0
        %418 = vmatpush1.msra.mxu0 0.0
        %419 = vmatprep.subr.mxu0 0.0
        %420 = vmatpush1.msra.mxu0 0.0
        %421 = vmatprep.subr.mxu0 0.0
        %422 = vmatpush1.msra.mxu0 0.0
        %423 = vmatprep.subr.mxu0 0.0
        %424 = vmatpush1.msra.mxu0 0.0
        %425 = vmatprep.subr.mxu0 0.0
        %426 = vmatpush1.msra.mxu0 0.0
        %427 = vmatprep.subr.mxu0 0.0
        %428 = vmatpush1.msra.mxu0 0.0
        %429 = vmatprep.subr.mxu0 0.0
        %430 = vmatpush1.msra.mxu0 0.0
        %431 = vmatprep.subr.mxu0 0.0
        %432 = vmatpush1.msra.mxu0 0.0
        %433 = vmatprep.subr.mxu0 0.0
        %434 = vmatpush1.msra.mxu0 0.0
        %435 = vmatprep.subr.mxu0 0.0
        %436 = vmatpush1.msra.mxu0 0.0
        %437 = vmatprep.subr.mxu0 0.0
        %438 = vmatpush1.msra.mxu0 0.0
        %439 = vmatprep.subr.mxu0 0.0
        %440 = vmatpush1.msra.mxu0 0.0
        %441 = vmatprep.subr.mxu0 0.0
        %442 = vmatpush1.msra.mxu0 0.0
        %443 = vmatprep.subr.mxu0 0.0
        %444 = vmatpush1.msra.mxu0 0.0
        %445 = vmatprep.subr.mxu0 0.0
        %446 = vmatpush1.msra.mxu0 0.0
        %447 = vmatprep.mubr.f32.mxu0 0.0
        %448 = vmatmul.mubr.f32.gmra.mrb[0].mxu0 %v378
        %v449 = vpop.f32.mrb[0].mxu0
        %v450 = vadd.f32 %v369, %v449
        %v451 = vpop.f32.mrb[0].mxu0
        %v452 = vadd.f32 %v369, %v451
        %453 = vmatprep.mubr.f32.mxu0 0.0
        %454 = vmatmul.mubr.f32.gmra.mrb[0].mxu0 %v381
        %v455 = vpop.f32.mrb[0].mxu0
        %v456 = vadd.f32 %v374, %v455
        %v457 = vpop.f32.mrb[0].mxu0
        %v458 = vadd.f32 %v374, %v457
        %459 = vdwg.mxu0
        %460 = vmatprep.subr.mxu0 %v349
        %461 = vmatpush1.msra.mxu0 %v348
        %462 = vmatprep.subr.mxu0 %v353
        %463 = vmatpush1.msra.mxu0 %v352
        %464 = vmatprep.subr.mxu0 %v357
        %465 = vmatpush1.msra.mxu0 %v356
        %466 = vmatprep.subr.mxu0 %v361
        %467 = vmatpush1.msra.mxu0 %v360
        %468 = vmatprep.subr.mxu0 0.0
        %469 = vmatpush1.msra.mxu0 0.0
        %470 = vmatprep.subr.mxu0 0.0
        %471 = vmatpush1.msra.mxu0 0.0
        %472 = vmatprep.subr.mxu0 0.0
        %473 = vmatpush1.msra.mxu0 0.0
        %474 = vmatprep.subr.mxu0 0.0
        %475 = vmatpush1.msra.mxu0 0.0
        %476 = vmatprep.subr.mxu0 0.0
        %477 = vmatpush1.msra.mxu0 0.0
        %478 = vmatprep.subr.mxu0 0.0
        %479 = vmatpush1.msra.mxu0 0.0
        %480 = vmatprep.subr.mxu0 0.0
        %481 = vmatpush1.msra.mxu0 0.0
        %482 = vmatprep.subr.mxu0 0.0
        %483 = vmatpush1.msra.mxu0 0.0
        %484 = vmatprep.subr.mxu0 0.0
        %485 = vmatpush1.msra.mxu0 0.0
        %486 = vmatprep.subr.mxu0 0.0
        %487 = vmatpush1.msra.mxu0 0.0
        %488 = vmatprep.subr.mxu0 0.0
        %489 = vmatpush1.msra.mxu0 0.0
        %490 = vmatprep.subr.mxu0 0.0
        %491 = vmatpush1.msra.mxu0 0.0
        %492 = vmatprep.subr.mxu0 0.0
        %493 = vmatpush1.msra.mxu0 0.0
        %494 = vmatprep.subr.mxu0 0.0
        %495 = vmatpush1.msra.mxu0 0.0
        %496 = vmatprep.subr.mxu0 0.0
        %497 = vmatpush1.msra.mxu0 0.0
        %498 = vmatprep.subr.mxu0 0.0
        %499 = vmatpush1.msra.mxu0 0.0
        %500 = vmatprep.subr.mxu0 0.0
        %501 = vmatpush1.msra.mxu0 0.0
        %502 = vmatprep.subr.mxu0 0.0
        %503 = vmatpush1.msra.mxu0 0.0
        %504 = vmatprep.subr.mxu0 0.0
        %505 = vmatpush1.msra.mxu0 0.0
        %506 = vmatprep.subr.mxu0 0.0
        %507 = vmatpush1.msra.mxu0 0.0
        %508 = vmatprep.subr.mxu0 0.0
        %509 = vmatpush1.msra.mxu0 0.0
        %510 = vmatprep.subr.mxu0 0.0
        %511 = vmatpush1.msra.mxu0 0.0
        %512 = vmatprep.subr.mxu0 0.0
        %513 = vmatpush1.msra.mxu0 0.0
        %514 = vmatprep.subr.mxu0 0.0
        %515 = vmatpush1.msra.mxu0 0.0
        %516 = vmatprep.subr.mxu0 0.0
        %517 = vmatpush1.msra.mxu0 0.0
        %518 = vmatprep.subr.mxu0 0.0
        %519 = vmatpush1.msra.mxu0 0.0
        %520 = vmatprep.subr.mxu0 0.0
        %521 = vmatpush1.msra.mxu0 0.0
        %522 = vmatprep.subr.mxu0 0.0
        %523 = vmatpush1.msra.mxu0 0.0
        %524 = vmatprep.mubr.f32.mxu0 0.0
        %525 = vmatmul.mubr.f32.gmra.mrb[0].mxu0 %v378
        %v526 = vpop.f32.mrb[0].mxu0
        %v527 = vadd.f32 %v369, %v526
        %v528 = vpop.f32.mrb[0].mxu0
        %v529 = vadd.f32 %v369, %v528
        %530 = vmatprep.mubr.f32.mxu0 0.0
        %531 = vmatmul.mubr.f32.gmra.mrb[0].mxu0 %v381
        %v532 = vpop.f32.mrb[0].mxu0
        %v533 = vadd.f32 %v374, %v532
        %v534 = vpop.f32.mrb[0].mxu0
        %v535 = vadd.f32 %v374, %v534
        %536 = vdwg.mxu0
        %v537 = vmax.f32 %v450, 0.0
        %v538 = vmax.f32 %v452, 0.0
        %v539 = vmax.f32 %v527, 0.0
        %v540 = vmax.f32 %v529, 0.0
        %v541 = vmax.f32 %v456, 0.0
        %v542 = vmax.f32 %v458, 0.0
        %v543 = vmax.f32 %v533, 0.0
        %v544 = vmax.f32 %v535, 0.0
        %v545 = vld [vmem:[#allocation2] sm:$0xff]
        %v546 = vld [vmem:[#allocation2 + $0x8] sm:$0xff]
        %v547 = vld [vmem:[#allocation2 + $0x10] sm:$0xff]
        %v548 = vld [vmem:[#allocation2 + $0x18] sm:$0xff]
        %v549 = vld [vmem:[#allocation2 + $0x20] sm:$0xff]
        %v550 = vld [vmem:[#allocation2 + $0x28] sm:$0xff]
        %v551 = vld [vmem:[#allocation2 + $0x30] sm:$0xff]
        %v552 = vld [vmem:[#allocation2 + $0x38] sm:$0xff]
        %v553 = vld [vmem:[#allocation2 + $0x40] sm:$0xff]
        %v554 = vld [vmem:[#allocation2 + $0x48] sm:$0xff]
        %v555 = vld [vmem:[#allocation2 + $0x50] sm:$0xff]
        %v556 = vld [vmem:[#allocation2 + $0x58] sm:$0xff]
        %v557 = vld [vmem:[%s328] sm:$0xff]
        %v558 = vld [vmem:[%s328 + $0x8] sm:$0xff]
        %v559 = vld [vmem:[%s328 + $0x10] sm:$0xff]
        %vm560 = vcmask 130048
        %v562 = vsel %vm560, %v557, 0
        %v565 = vsel %vm560, %v558, 0
        %v568 = vsel %vm560, %v559, 0
        %570 = vmatprep.subr.mxu0 %v538
        %571 = vmatpush1.msra.mxu0 %v537
        %572 = vmatprep.subr.mxu0 %v542
        %573 = vmatpush1.msra.mxu0 %v541
        %574 = vmatprep.subr.mxu0 0.0
        %575 = vmatpush1.msra.mxu0 0.0
        %576 = vmatprep.subr.mxu0 0.0
        %577 = vmatpush1.msra.mxu0 0.0
        %578 = vmatprep.subr.mxu0 0.0
        %579 = vmatpush1.msra.mxu0 0.0
        %580 = vmatprep.subr.mxu0 0.0
        %581 = vmatpush1.msra.mxu0 0.0
        %582 = vmatprep.subr.mxu0 0.0
        %583 = vmatpush1.msra.mxu0 0.0
        %584 = vmatprep.subr.mxu0 0.0
        %585 = vmatpush1.msra.mxu0 0.0
        %586 = vmatprep.subr.mxu0 0.0
        %587 = vmatpush1.msra.mxu0 0.0
        %588 = vmatprep.subr.mxu0 0.0
        %589 = vmatpush1.msra.mxu0 0.0
        %590 = vmatprep.subr.mxu0 0.0
        %591 = vmatpush1.msra.mxu0 0.0
        %592 = vmatprep.subr.mxu0 0.0
        %593 = vmatpush1.msra.mxu0 0.0
        %594 = vmatprep.subr.mxu0 0.0
        %595 = vmatpush1.msra.mxu0 0.0
        %596 = vmatprep.subr.mxu0 0.0
        %597 = vmatpush1.msra.mxu0 0.0
        %598 = vmatprep.subr.mxu0 0.0
        %599 = vmatpush1.msra.mxu0 0.0
        %600 = vmatprep.subr.mxu0 0.0
        %601 = vmatpush1.msra.mxu0 0.0
        %602 = vmatprep.subr.mxu0 0.0
        %603 = vmatpush1.msra.mxu0 0.0
        %604 = vmatprep.subr.mxu0 0.0
        %605 = vmatpush1.msra.mxu0 0.0
        %606 = vmatprep.subr.mxu0 0.0
        %607 = vmatpush1.msra.mxu0 0.0
        %608 = vmatprep.subr.mxu0 0.0
        %609 = vmatpush1.msra.mxu0 0.0
        %610 = vmatprep.subr.mxu0 0.0
        %611 = vmatpush1.msra.mxu0 0.0
        %612 = vmatprep.subr.mxu0 0.0
        %613 = vmatpush1.msra.mxu0 0.0
        %614 = vmatprep.subr.mxu0 0.0
        %615 = vmatpush1.msra.mxu0 0.0
        %616 = vmatprep.subr.mxu0 0.0
        %617 = vmatpush1.msra.mxu0 0.0
        %618 = vmatprep.subr.mxu0 0.0
        %619 = vmatpush1.msra.mxu0 0.0
        %620 = vmatprep.subr.mxu0 0.0
        %621 = vmatpush1.msra.mxu0 0.0
        %622 = vmatprep.subr.mxu0 0.0
        %623 = vmatpush1.msra.mxu0 0.0
        %624 = vmatprep.subr.mxu0 0.0
        %625 = vmatpush1.msra.mxu0 0.0
        %626 = vmatprep.subr.mxu0 0.0
        %627 = vmatpush1.msra.mxu0 0.0
        %628 = vmatprep.subr.mxu0 0.0
        %629 = vmatpush1.msra.mxu0 0.0
        %630 = vmatprep.subr.mxu0 0.0
        %631 = vmatpush1.msra.mxu0 0.0
        %632 = vmatprep.subr.mxu0 0.0
        %633 = vmatpush1.msra.mxu0 0.0
        %634 = vmatprep.mubr.f32.mxu0 0.0
        %635 = vmatmul.mubr.f32.gmra.mrb[0].mxu0 %v562
        %v636 = vpop.f32.mrb[0].mxu0
        %v637 = vadd.f32 0.0, %v636
        %v638 = vpop.f32.mrb[0].mxu0
        %v639 = vadd.f32 0.0, %v638
        %640 = vmatprep.mubr.f32.mxu0 0.0
        %641 = vmatmul.mubr.f32.gmra.mrb[0].mxu0 %v565
        %v642 = vpop.f32.mrb[0].mxu0
        %v643 = vadd.f32 0.0, %v642
        %v644 = vpop.f32.mrb[0].mxu0
        %v645 = vadd.f32 0.0, %v644
        %646 = vmatprep.mubr.f32.mxu0 0.0
        %647 = vmatmul.mubr.f32.gmra.mrb[0].mxu0 %v568
        %v648 = vpop.f32.mrb[0].mxu0
        %v649 = vadd.f32 0.0, %v648
        %v650 = vpop.f32.mrb[0].mxu0
        %v651 = vadd.f32 0.0, %v650
        %652 = vdwg.mxu0
        %653 = vmatprep.subr.mxu0 %v540
        %654 = vmatpush1.msra.mxu0 %v539
        %655 = vmatprep.subr.mxu0 %v544
        %656 = vmatpush1.msra.mxu0 %v543
        %657 = vmatprep.subr.mxu0 0.0
        %658 = vmatpush1.msra.mxu0 0.0
        %659 = vmatprep.subr.mxu0 0.0
        %660 = vmatpush1.msra.mxu0 0.0
        %661 = vmatprep.subr.mxu0 0.0
        %662 = vmatpush1.msra.mxu0 0.0
        %663 = vmatprep.subr.mxu0 0.0
        %664 = vmatpush1.msra.mxu0 0.0
        %665 = vmatprep.subr.mxu0 0.0
        %666 = vmatpush1.msra.mxu0 0.0
        %667 = vmatprep.subr.mxu0 0.0
        %668 = vmatpush1.msra.mxu0 0.0
        %669 = vmatprep.subr.mxu0 0.0
        %670 = vmatpush1.msra.mxu0 0.0
        %671 = vmatprep.subr.mxu0 0.0
        %672 = vmatpush1.msra.mxu0 0.0
        %673 = vmatprep.subr.mxu0 0.0
        %674 = vmatpush1.msra.mxu0 0.0
        %675 = vmatprep.subr.mxu0 0.0
        %676 = vmatpush1.msra.mxu0 0.0
        %677 = vmatprep.subr.mxu0 0.0
        %678 = vmatpush1.msra.mxu0 0.0
        %679 = vmatprep.subr.mxu0 0.0
        %680 = vmatpush1.msra.mxu0 0.0
        %681 = vmatprep.subr.mxu0 0.0
        %682 = vmatpush1.msra.mxu0 0.0
        %683 = vmatprep.subr.mxu0 0.0
        %684 = vmatpush1.msra.mxu0 0.0
        %685 = vmatprep.subr.mxu0 0.0
        %686 = vmatpush1.msra.mxu0 0.0
        %687 = vmatprep.subr.mxu0 0.0
        %688 = vmatpush1.msra.mxu0 0.0
        %689 = vmatprep.subr.mxu0 0.0
        %690 = vmatpush1.msra.mxu0 0.0
        %691 = vmatprep.subr.mxu0 0.0
        %692 = vmatpush1.msra.mxu0 0.0
        %693 = vmatprep.subr.mxu0 0.0
        %694 = vmatpush1.msra.mxu0 0.0
        %695 = vmatprep.subr.mxu0 0.0
        %696 = vmatpush1.msra.mxu0 0.0
        %697 = vmatprep.subr.mxu0 0.0
        %698 = vmatpush1.msra.mxu0 0.0
        %699 = vmatprep.subr.mxu0 0.0
        %700 = vmatpush1.msra.mxu0 0.0
        %701 = vmatprep.subr.mxu0 0.0
        %702 = vmatpush1.msra.mxu0 0.0
        %703 = vmatprep.subr.mxu0 0.0
        %704 = vmatpush1.msra.mxu0 0.0
        %705 = vmatprep.subr.mxu0 0.0
        %706 = vmatpush1.msra.mxu0 0.0
        %707 = vmatprep.subr.mxu0 0.0
        %708 = vmatpush1.msra.mxu0 0.0
        %709 = vmatprep.subr.mxu0 0.0
        %710 = vmatpush1.msra.mxu0 0.0
        %711 = vmatprep.subr.mxu0 0.0
        %712 = vmatpush1.msra.mxu0 0.0
        %713 = vmatprep.subr.mxu0 0.0
        %714 = vmatpush1.msra.mxu0 0.0
        %715 = vmatprep.subr.mxu0 0.0
        %716 = vmatpush1.msra.mxu0 0.0
        %717 = vmatprep.mubr.f32.mxu0 0.0
        %718 = vmatmul.mubr.f32.gmra.mrb[0].mxu0 %v562
        %v719 = vpop.f32.mrb[0].mxu0
        %v720 = vadd.f32 0.0, %v719
        %v721 = vpop.f32.mrb[0].mxu0
        %v722 = vadd.f32 0.0, %v721
        %723 = vmatprep.mubr.f32.mxu0 0.0
        %724 = vmatmul.mubr.f32.gmra.mrb[0].mxu0 %v565
        %v725 = vpop.f32.mrb[0].mxu0
        %v726 = vadd.f32 0.0, %v725
        %v727 = vpop.f32.mrb[0].mxu0
        %v728 = vadd.f32 0.0, %v727
        %729 = vmatprep.mubr.f32.mxu0 0.0
        %730 = vmatmul.mubr.f32.gmra.mrb[0].mxu0 %v568
        %v731 = vpop.f32.mrb[0].mxu0
        %v732 = vadd.f32 0.0, %v731
        %v733 = vpop.f32.mrb[0].mxu0
        %v734 = vadd.f32 0.0, %v733
        %735 = vdwg.mxu0
        %v736 = vadd.f32 %v545, %v637
        %v737 = vadd.f32 %v546, %v639
        %v738 = vadd.f32 %v547, %v720
        %v739 = vadd.f32 %v548, %v722
        %v740 = vadd.f32 %v549, %v643
        %v741 = vadd.f32 %v550, %v645
        %v742 = vadd.f32 %v551, %v726
        %v743 = vadd.f32 %v552, %v728
        %v744 = vadd.f32 %v553, %v649
        %v745 = vadd.f32 %v554, %v651
        %v746 = vadd.f32 %v555, %v732
        %v747 = vadd.f32 %v556, %v734
        %748 = vst [vmem:[#allocation2] sm:$0xff] %v736
        %749 = vst [vmem:[#allocation2 + $0x8] sm:$0xff] %v737
        %750 = vst [vmem:[#allocation2 + $0x10] sm:$0xff] %v738
        %751 = vst [vmem:[#allocation2 + $0x18] sm:$0xff] %v739
        %752 = vst [vmem:[#allocation2 + $0x20] sm:$0xff] %v740
        %753 = vst [vmem:[#allocation2 + $0x28] sm:$0xff] %v741
        %754 = vst [vmem:[#allocation2 + $0x30] sm:$0xff] %v742
        %755 = vst [vmem:[#allocation2 + $0x38] sm:$0xff] %v743
        %756 = vst [vmem:[#allocation2 + $0x40] sm:$0xff] %v744
        %757 = vst [vmem:[#allocation2 + $0x48] sm:$0xff] %v745
        %758 = vst [vmem:[#allocation2 + $0x50] sm:$0xff] %v746
        %759 = vst [vmem:[#allocation2 + $0x58] sm:$0xff] %v747
        // Predicated region
        $region64: #{condense_conv.1} parent=54 // pred_check
          %p760 = pneg %p330
        $region65: #{condense_conv.1} parent=54 // pred_check_branch
          %762 = sbr.rel (%p760) target = $region67
        $region66: #{condense_conv.1} parent=54 // pred_region
          %v763 = vld [vmem:[#allocation2] sm:$0xff]
          %v764 = vld [vmem:[#allocation2 + $0x8] sm:$0xff]
          %v765 = vld [vmem:[#allocation2 + $0x10] sm:$0xff]
          %v766 = vld [vmem:[#allocation2 + $0x18] sm:$0xff]
          %v767 = vld [vmem:[#allocation2 + $0x20] sm:$0xff]
          %v768 = vld [vmem:[#allocation2 + $0x28] sm:$0xff]
          %v769 = vld [vmem:[#allocation2 + $0x30] sm:$0xff]
          %v770 = vld [vmem:[#allocation2 + $0x38] sm:$0xff]
          %v771 = vld [vmem:[#allocation2 + $0x40] sm:$0xff]
          %v772 = vld [vmem:[#allocation2 + $0x48] sm:$0xff]
          %v773 = vld [vmem:[#allocation2 + $0x50] sm:$0xff]
          %v774 = vld [vmem:[#allocation2 + $0x58] sm:$0xff]
          %775 = vst [vmem:[%s311] sm:$0xff] %v763
          %776 = vst [vmem:[%s311 + $0x8] sm:$0xff] %v764
          %777 = vst [vmem:[%s311 + $0x10] sm:$0xff] %v765
          %778 = vst [vmem:[%s311 + $0x18] sm:$0xff] %v766
          %779 = vst [vmem:[%s311 + $0x20] sm:$0xff] %v767
          %780 = vst [vmem:[%s311 + $0x28] sm:$0xff] %v768
          %781 = vst [vmem:[%s311 + $0x30] sm:$0xff] %v769
          %782 = vst [vmem:[%s311 + $0x38] sm:$0xff] %v770
          %783 = vst [vmem:[%s311 + $0x40] sm:$0xff] %v771
          %784 = vst [vmem:[%s311 + $0x48] sm:$0xff] %v772
          %785 = vst [vmem:[%s311 + $0x50] sm:$0xff] %v773
          %786 = vst [vmem:[%s311 + $0x58] sm:$0xff] %v774
        $region67: #{condense_conv.1} parent=54 // pred_fallthru
          _
        %s787 = sand.u32 %s150, 1
        %s788 = sand.u32 %s150, 1
        %s789 = smul.addr %s788, 96
        %s790 = scalar_lea.vmem [#allocation4], %s789
        // Predicated region
        $region68: #{condense_conv.1} parent=54 // pred_check
          %p791 = pneg %p160
        $region69: #{condense_conv.1} parent=54 // pred_check_branch
          %793 = sbr.rel (%p791) target = $region71
        $region70: #{condense_conv.1} parent=54 // pred_region
          %s794 = smul.u32 4, %s21
          %s795 = smul.addr %s20, 24
          %s796 = sadd.s32 %s794, %s795
          %s797 = smul.addr %s796, 8
          %s798 = scalar_lea.vmem %s4, %s797
          // Predicated region
          $region72: #{condense_conv.1} parent=70 // pred_check
            _
          $region73: #{condense_conv.1} parent=70 // pred_check_branch
            %800 = sbr.rel (0) target = $region75
          $region74: #{condense_conv.1} parent=70 // pred_region
            // Predicated region
            $region76: #{condense_conv.1} parent=74 // pred_check
              _
            $region77: #{condense_conv.1} parent=74 // pred_check_branch
              %802 = sbr.rel (0) target = $region79
            $region78: #{condense_conv.1} parent=74 // pred_region
              loop: start=0, step=1, limit=1
              $region80: #{condense_conv.1} parent=78 // loop_pre_header
                _
              $region81: #{condense_conv.1} parent=78 // loop_header
                %s804 = sphi 0, %s808
                %p805 = scmp.ge.s32.totalorder %s804, 1
                %s809 = sphi %s790, %s790
                %s810 = sphi %s798, %s798
              $region82: #{condense_conv.1} parent=78 // loop_header_branch
                %807 = sbr.rel (%p805) target = $region86
              $region83: #{condense_conv.1} parent=78 // loop_body
                %v811 = vld [vmem:[%s809] sm:$0xff]
                %812 = vst [vmem:[%s810] sm:$0xff] %v811
                %v813 = vld [vmem:[%s809 + $0x8] sm:$0xff]
                %814 = vst [vmem:[%s810 + $0x8] sm:$0xff] %v813
                %v815 = vld [vmem:[%s809 + $0x10] sm:$0xff]
                %816 = vst [vmem:[%s810 + $0x10] sm:$0xff] %v815
                %v817 = vld [vmem:[%s809 + $0x18] sm:$0xff]
                %818 = vst [vmem:[%s810 + $0x18] sm:$0xff] %v817
                %v819 = vld [vmem:[%s809 + $0x20] sm:$0xff]
                %820 = vst [vmem:[%s810 + $0x40] sm:$0xff] %v819
                %v821 = vld [vmem:[%s809 + $0x28] sm:$0xff]
                %822 = vst [vmem:[%s810 + $0x48] sm:$0xff] %v821
                %v823 = vld [vmem:[%s809 + $0x30] sm:$0xff]
                %824 = vst [vmem:[%s810 + $0x50] sm:$0xff] %v823
                %v825 = vld [vmem:[%s809 + $0x38] sm:$0xff]
                %826 = vst [vmem:[%s810 + $0x58] sm:$0xff] %v825
                %v827 = vld [vmem:[%s809 + $0x40] sm:$0xff]
                %828 = vst [vmem:[%s810 + $0x80] sm:$0xff] %v827
                %v829 = vld [vmem:[%s809 + $0x48] sm:$0xff]
                %830 = vst [vmem:[%s810 + $0x88] sm:$0xff] %v829
                %v831 = vld [vmem:[%s809 + $0x50] sm:$0xff]
                %832 = vst [vmem:[%s810 + $0x90] sm:$0xff] %v831
                %v833 = vld [vmem:[%s809 + $0x58] sm:$0xff]
                %834 = vst [vmem:[%s810 + $0x98] sm:$0xff] %v833
              $region84: #{condense_conv.1} parent=78 // loop_footer
                %s808 = sadd.s32 1, %s804
              $region85: #{condense_conv.1} parent=78 // loop_footer_branch
                %803 = sbr.rel target = $region81
              $region86: #{condense_conv.1} parent=78 // loop_exit
                _
            $region79: #{condense_conv.1} parent=74 // pred_fallthru
              _
            // Predicated region
            $region87: #{condense_conv.1} parent=74 // pred_check
              _
            $region88: #{condense_conv.1} parent=74 // pred_check_branch
              %836 = sbr.rel target = $region90
            $region89: #{condense_conv.1} parent=74 // pred_region
              _
            $region90: #{condense_conv.1} parent=74 // pred_fallthru
              _
          $region75: #{condense_conv.1} parent=70 // pred_fallthru
            _
          %837 = vnop
        $region71: #{condense_conv.1} parent=54 // pred_fallthru
          _
      $region55: #{condense_conv.1} parent=5 // pred_fallthru
        _
      %p838 = scmp.le.s32.totalorder 2, %s10
      // Predicated region
      $region91: #{condense_conv.1} parent=5 // pred_check
        %p839 = pneg %p838
      $region92: #{condense_conv.1} parent=5 // pred_check_branch
        %841 = sbr.rel (%p839) target = $region94
      $region93: #{condense_conv.1} parent=5 // pred_region
        %s842 = ssub.s32 %s10, 2
        // Predicated region
        $region95: #{condense_conv.1} parent=93 // pred_check
          %p843 = pneg %p166
        $region96: #{condense_conv.1} parent=93 // pred_check_branch
          %845 = sbr.rel (%p843) target = $region98
        $region97: #{condense_conv.1} parent=93 // pred_region
          %s846 = sand.u32 %s151, 1
          %s847 = sand.u32 %s151, 1
          %s848 = smul.addr %s847, 96
          %s849 = scalar_lea.vmem [#allocation4], %s848
        $region98: #{condense_conv.1} parent=93 // pred_fallthru
          _
      $region94: #{condense_conv.1} parent=5 // pred_fallthru
        _
    $region6: #{condense_conv.1} parent=1 // loop_footer
      %s14 = sadd.s32 1, %s10
    $region7: #{condense_conv.1} parent=1 // loop_footer_branch
      %9 = sbr.rel target = $region3
    $region8: #{condense_conv.1} parent=1 // loop_exit
      _

</llo_original>
